<compile_context>
chip_gen: v7x
topology: tpu7x:2x2x1
jax: 0.10.0
libtpu: 0.0.40
codegen_flags: <defaults>
</compile_context>

<pallas_src>
import functools

import jax
import jax.numpy as jnp
from jax.experimental import pallas as pl
from jax.experimental.pallas import tpu as pltpu

LN_EPS = 1e-5                          # torch.nn.LayerNorm default
_VMEM_LIMIT_BYTES = 32 * 1024 * 1024   # within physical VMEM on v5e/v6e/v7x


# ---------------------------------------------------------------------------
# tiling helpers
# ---------------------------------------------------------------------------
def _round_up(x, m):
    return ((x + m - 1) // m) * m


def _pick_row_tile(rows, cap=256):
    """Row tile <= cap, multiple of 8; split so megacore/v7x gets >= 2 tiles."""
    bm = min(cap, _round_up(rows, 8))
    if rows >= 16:
        bm = min(bm, _round_up((rows + 1) // 2, 8))
    return max(8, bm)


def _pick_col_tile(cols, cap=512):
    """Lane-dense output tile: prefer 256-multiples (v6e/v7x MXU), cap 512."""
    if cols % 128 != 0:
        return cols                    # full (possibly masked) extent
    cap = min(cap, cols)
    for step in (256, 128):
        t = (cap // step) * step
        while t >= step:
            if cols % t == 0:
                return t
            t -= step
    return cols


# ---------------------------------------------------------------------------
# Kernel 1: fused LayerNorm(last dim) + Linear (+ optional ReLU)
#   serves:  PreNorm -> to_qkv   and   PreNorm -> FF first Linear + ReLU
# ---------------------------------------------------------------------------
def _ln_matmul_kernel(x_ref, g_ref, b_ref, w_ref, bias_ref, o_ref, xn_ref, *, relu):
    # LayerNorm once per row tile (j == 0), reused for every column tile.
    @pl.when(pl.program_id(1) == 0)
    def _():
        x = x_ref[...].astype(jnp.float32)
        mean = jnp.mean(x, axis=-1, keepdims=True)
        xc = x - mean
        var = jnp.mean(xc * xc, axis=-1, keepdims=True)
        xn = xc * jax.lax.rsqrt(var + LN_EPS)
        xn = xn * g_ref[...].astype(jnp.float32) + b_ref[...].astype(jnp.float32)
        xn_ref[...] = xn.astype(xn_ref.dtype)            # bf16 for the MXU

    y = jnp.dot(xn_ref[...], w_ref[...], preferred_element_type=jnp.float32)
    y = y + bias_ref[...].astype(jnp.float32)
    if relu:
        y = jnp.maximum(y, 0.0)
    o_ref[...] = y.astype(o_ref.dtype)


def ln_linear(x2d, gamma, beta, w_bf16, bias, *, relu=False, out_dtype=None):
    """y = LayerNorm(x2d) @ w + bias, optionally ReLU'd.  bf16 MXU, f32 acc."""
    R, D = x2d.shape
    H = w_bf16.shape[1]
    out_dtype = out_dtype or x2d.dtype
    bm = _pick_row_tile(R)
    tn = _pick_col_tile(H)
    grid = (pl.cdiv(R, bm), pl.cdiv(H, tn))
    # TODO(synk): add a K grid axis + f32 accumulator scratch for very large D
    # (needs a two-pass LayerNorm); full-D blocks fit comfortably at these dims.
    return pl.pallas_call(
        functools.partial(_ln_matmul_kernel, relu=relu),
        out_shape=jax.ShapeDtypeStruct((R, H), out_dtype),
        grid_spec=pltpu.PrefetchScalarGridSpec(
            num_scalar_prefetch=0,
            grid=grid,
            in_specs=[
                pl.BlockSpec((bm, D), lambda i, j: (i, 0)),   # rows stay resident over j
                pl.BlockSpec((1, D), lambda i, j: (0, 0)),
                pl.BlockSpec((1, D), lambda i, j: (0, 0)),
                pl.BlockSpec((D, tn), lambda i, j: (0, j)),
                pl.BlockSpec((1, tn), lambda i, j: (0, j)),
            ],
            out_specs=pl.BlockSpec((bm, tn), lambda i, j: (i, j)),
            scratch_shapes=[pltpu.VMEM((bm, D), jnp.bfloat16)],
        ),
        compiler_params=pltpu.CompilerParams(
            dimension_semantics=("parallel", "arbitrary"),
            vmem_limit_bytes=_VMEM_LIMIT_BYTES),
    )(x2d, gamma.reshape(1, D), beta.reshape(1, D), w_bf16, bias.reshape(1, H))


# ---------------------------------------------------------------------------
# Kernel 2: fused Linear + bias + residual add
#   serves:  attention output projection + residual,  FF second Linear + residual
# ---------------------------------------------------------------------------
def _matmul_bias_res_kernel(x_ref, w_ref, bias_ref, res_ref, o_ref):
    y = jnp.dot(x_ref[...].astype(jnp.bfloat16), w_ref[...],
                preferred_element_type=jnp.float32)
    y = y + bias_ref[...].astype(jnp.float32) + res_ref[...].astype(jnp.float32)
    o_ref[...] = y.astype(o_ref.dtype)


def linear_bias_residual(x2d, w_bf16, bias, residual, *, out_dtype=None):
    """y = x2d @ w + bias + residual.  x2d: (R, K); w: (K, H); residual: (R, H)."""
    R, K = x2d.shape
    H = w_bf16.shape[1]
    out_dtype = out_dtype or residual.dtype
    bm = _pick_row_tile(R)
    tn = _pick_col_tile(H)
    grid = (pl.cdiv(R, bm), pl.cdiv(H, tn))
    # TODO(synk): K-axis tiling with an accumulator scratch for very large K.
    return pl.pallas_call(
        _matmul_bias_res_kernel,
        out_shape=jax.ShapeDtypeStruct((R, H), out_dtype),
        grid_spec=pltpu.PrefetchScalarGridSpec(
            num_scalar_prefetch=0,
            grid=grid,
            in_specs=[
                pl.BlockSpec((bm, K), lambda i, j: (i, 0)),
                pl.BlockSpec((K, tn), lambda i, j: (0, j)),
                pl.BlockSpec((1, tn), lambda i, j: (0, j)),
                pl.BlockSpec((bm, tn), lambda i, j: (i, j)),
            ],
            out_specs=pl.BlockSpec((bm, tn), lambda i, j: (i, j)),
        ),
        compiler_params=pltpu.CompilerParams(
            dimension_semantics=("parallel", "parallel"),
            vmem_limit_bytes=_VMEM_LIMIT_BYTES),
    )(x2d, w_bf16, bias.reshape(1, H), residual)


# ---------------------------------------------------------------------------
# Kernel 3: attention core, ALL heads of one batch element per grid step.
#   input  block (1, N, 3*h*dh)  (qkv already in [q|k|v], head-major order)
#   output block (1, N, h*dh)    (lane-dense, exactly the out-proj layout)
# ---------------------------------------------------------------------------
def _attention_kernel(qkv_ref, o_ref, *, heads, dim_head, scale):
    inner = heads * dim_head
    qkv = qkv_ref[0]                                        # (N, 3*inner)
    outs = []
    for h in range(heads):                                  # static unroll (small)
        lo = h * dim_head
        # scale folded into q before the matmul (O(N*dh) instead of O(N*N))
        q = (qkv[:, lo:lo + dim_head].astype(jnp.float32) * scale
             ).astype(jnp.bfloat16)
        k = qkv[:, inner + lo:inner + lo + dim_head].astype(jnp.bfloat16)
        v = qkv[:, 2 * inner + lo:2 * inner + lo + dim_head].astype(jnp.bfloat16)
        # q @ k^T without materializing the transpose: contract the last dims.
        dots = jax.lax.dot_general(q, k, (((1,), (1,)), ((), ())),
                                   preferred_element_type=jnp.float32)  # (N, N)
        m = jnp.max(dots, axis=-1, keepdims=True)
        e = jnp.exp(dots - m)                               # unnormalized probs
        s = jnp.sum(e, axis=-1, keepdims=True)              # (N, 1)
        o = jnp.dot(e.astype(jnp.bfloat16), v,
                    preferred_element_type=jnp.float32)     # (N, dh)
        # deferred softmax normalization on the EUP path
        outs.append(o * pl.reciprocal(s, approx=True))
    out = jnp.concatenate(outs, axis=-1)                    # (N, h*dh) lane-dense
    o_ref[0] = out.astype(o_ref.dtype)


def attention_core(qkv, *, heads, dim_head, scale, out_dtype=jnp.bfloat16):
    """qkv: (B, N, 3*h*dh) -> (B, N, h*dh); one grid step per batch element."""
    B, N, three_inner = qkv.shape
    inner = heads * dim_head
    # TODO(synk): for long N (esp. v7x's 64 MiB VMEM) switch to a kv-tiled
    # online-softmax (flash) kernel; at these sizes everything fits VMEM.
    return pl.pallas_call(
        functools.partial(_attention_kernel, heads=heads, dim_head=dim_head,
                          scale=scale),
        out_shape=jax.ShapeDtypeStruct((B, N, inner), out_dtype),
        grid_spec=pltpu.PrefetchScalarGridSpec(
            num_scalar_prefetch=0,
            grid=(B,),
            in_specs=[pl.BlockSpec((1, N, three_inner), lambda b: (b, 0, 0))],
            out_specs=pl.BlockSpec((1, N, inner), lambda b: (b, 0, 0)),
        ),
        compiler_params=pltpu.CompilerParams(
            dimension_semantics=("parallel",),
            vmem_limit_bytes=_VMEM_LIMIT_BYTES),
    )(qkv)


# ---------------------------------------------------------------------------
# Transformer forward (matches the PyTorch module in eval mode, dropout = 0)
# ---------------------------------------------------------------------------
class Transformer:
    def __init__(self, dim, depth, heads, dim_head, mlp_dim, dropout=0.0, *, key=None):
        if key is None:
            key = jax.random.PRNGKey(0)
        self.dim = dim
        self.heads = heads
        self.dim_head = dim_head
        self.scale = dim ** (-0.5)   # faithful to the reference module: dim, not dim_head
        self.mlp_dim = mlp_dim
        # TODO(synk): training-mode dropout not implemented; forward matches
        # eval() / dropout=0.0 semantics (identity).
        inner = heads * dim_head
        self.layers = []
        for _ in range(depth):
            key, *ks = jax.random.split(key, 7)
            p = dict(
                ln1_g=jnp.ones((dim,), jnp.float32),
                ln1_b=jnp.zeros((dim,), jnp.float32),
                w_qkv=jax.random.normal(ks[0], (dim, inner * 3), jnp.float32) * 0.02,
                w_o=jax.random.normal(ks[1], (inner, dim), jnp.float32) * 0.02,
                b_o=jax.random.normal(ks[2], (dim,), jnp.float32) * 0.02,
                ln2_g=jnp.ones((dim,), jnp.float32),
                ln2_b=jnp.zeros((dim,), jnp.float32),
                w1=jax.random.normal(ks[3], (dim, mlp_dim), jnp.float32) * 0.02,
                b1=jax.random.normal(ks[4], (mlp_dim,), jnp.float32) * 0.02,
                w2=jax.random.normal(ks[5], (mlp_dim, dim), jnp.float32) * 0.02,
                b2=jnp.zeros((dim,), jnp.float32),
            )
            # bf16 copies (cast once at init) feeding the MXU fast path.
            p["w_qkv_bf"] = p["w_qkv"].astype(jnp.bfloat16)
            p["w_o_bf"] = p["w_o"].astype(jnp.bfloat16)
            p["w1_bf"] = p["w1"].astype(jnp.bfloat16)
            p["w2_bf"] = p["w2"].astype(jnp.bfloat16)
            self.layers.append(p)
        self._zero_qkv_bias = jnp.zeros((inner * 3,), jnp.float32)

    # Residual(PreNorm(Attention))
    def _attention_block(self, x, p):
        B, N, D = x.shape
        inner = self.heads * self.dim_head
        x2d = x.reshape(B * N, D)
        # fused LayerNorm + qkv projection (to_qkv has no bias); columns are
        # already [q | k | v] head-major, so no XLA permute is needed.
        qkv = ln_linear(x2d, p["ln1_g"], p["ln1_b"], p["w_qkv_bf"],
                        self._zero_qkv_bias, relu=False, out_dtype=jnp.bfloat16)
        qkv = qkv.reshape(B, N, 3 * inner)                  # free reshape
        attn = attention_core(qkv, heads=self.heads, dim_head=self.dim_head,
                              scale=self.scale)             # (B, N, inner)
        # fused output projection + bias + residual add
        y = linear_bias_residual(attn.reshape(B * N, inner), p["w_o_bf"],
                                 p["b_o"], x2d)
        return y.reshape(B, N, D)

    # Residual(PreNorm(FeedForward))
    def _ff_block(self, x, p):
        B, N, D = x.shape
        x2d = x.reshape(B * N, D)
        hid = ln_linear(x2d, p["ln2_g"], p["ln2_b"], p["w1_bf"], p["b1"],
                        relu=True, out_dtype=jnp.bfloat16)
        y = linear_bias_residual(hid, p["w2_bf"], p["b2"], x2d)
        return y.reshape(B, N, D)

    def __call__(self, x):
        for p in self.layers:
            x = self._attention_block(x, p)
            x = self._ff_block(x, p)
        return x


# ---------------------------------------------------------------------------
# pure-JAX reference (f32 throughout)
# ---------------------------------------------------------------------------
def _ref_layernorm(x, g, b):
    mean = jnp.mean(x, axis=-1, keepdims=True)
    var = jnp.mean((x - mean) ** 2, axis=-1, keepdims=True)
    return (x - mean) / jnp.sqrt(var + LN_EPS) * g + b


def ref_transformer(x, model):
    h, dh = model.heads, model.dim_head
    inner = h * dh
    for p in model.layers:
        B, N, D = x.shape
        xn = _ref_layernorm(x, p["ln1_g"], p["ln1_b"])
        qkv = jnp.einsum("bnd,de->bne", xn, p["w_qkv"]).reshape(B, N, 3, h, dh)
        q = jnp.transpose(qkv[:, :, 0], (0, 2, 1, 3))
        k = jnp.transpose(qkv[:, :, 1], (0, 2, 1, 3))
        v = jnp.transpose(qkv[:, :, 2], (0, 2, 1, 3))
        dots = jnp.einsum("bhid,bhjd->bhij", q, k) * model.scale
        attn = jax.nn.softmax(dots, axis=-1)
        out = jnp.einsum("bhij,bhjd->bhid", attn, v)
        out = jnp.transpose(out, (0, 2, 1, 3)).reshape(B, N, inner)
        x = jnp.einsum("bni,id->bnd", out, p["w_o"]) + p["b_o"] + x
        xn = _ref_layernorm(x, p["ln2_g"], p["ln2_b"])
        hid = jnp.maximum(jnp.einsum("bnd,dm->bnm", xn, p["w1"]) + p["b1"], 0.0)
        x = jnp.einsum("bnm,md->bnd", hid, p["w2"]) + p["b2"] + x
    return x


if __name__ == "__main__":
    key = jax.random.PRNGKey(0)
    kx, kp = jax.random.split(key)

    # Small but lane-dense shapes: dim, inner (= heads*dim_head) and mlp_dim
    # are all multiples of 128.
    B, N = 2, 16
    dim, depth, heads, dim_head, mlp_dim = 128, 2, 4, 32, 256

    x = jax.random.normal(kx, (B, N, dim), jnp.float32)

    model = Transformer(dim, depth, heads, dim_head, mlp_dim, dropout=0.0, key=kp)
    out = jax.block_until_ready(model(x))

    ref = ref_transformer(x, model)
    assert out.shape == (B, N, dim)
    max_err = float(jnp.max(jnp.abs(out - ref)))
    assert jnp.allclose(out, ref, atol=2e-2, rtol=2e-2), max_err

    print("KERNEL_OK")
</pallas_src>

<mosaic_0001>
module attributes {stable_mosaic.version = 11 : i64} {
  func.func @_ln_matmul_kernel(%arg0: i32, %arg1: i32, %arg2: memref<16x128xf32, #tpu.memory_space<vmem>>, %arg3: memref<1x128xf32, #tpu.memory_space<vmem>>, %arg4: memref<1x128xf32, #tpu.memory_space<vmem>>, %arg5: memref<128x384xbf16, #tpu.memory_space<vmem>>, %arg6: memref<1x384xf32, #tpu.memory_space<vmem>>, %arg7: memref<16x384xbf16, #tpu.memory_space<vmem>>, %arg8: memref<16x128xbf16, #tpu.memory_space<vmem>>) attributes {dimension_semantics = [#tpu.dimension_semantics<parallel>, #tpu.dimension_semantics<arbitrary>], iteration_bounds = array<i64: 2, 1>, scalar_prefetch = 0 : i64, scratch_operands = 1 : i64, tpu.core_type = #tpu.core_type<tc>, window_params = [{transform_indices = @transform_0, window_bounds = array<i64: 16, 128>}, {pipeline_mode = #tpu.pipeline_mode<synchronous>, transform_indices = @transform_1, window_bounds = array<i64: 1, 128>}, {pipeline_mode = #tpu.pipeline_mode<synchronous>, transform_indices = @transform_2, window_bounds = array<i64: 1, 128>}, {transform_indices = @transform_3, window_bounds = array<i64: 128, 384>}, {transform_indices = @transform_4, window_bounds = array<i64: 1, 384>}, {transform_indices = @transform_5, window_bounds = array<i64: 16, 384>}]} {
    %c0_i32 = arith.constant 0 : i32
    %0 = arith.cmpi eq, %arg1, %c0_i32 : i32
    %1 = arith.extui %0 : i1 to i32
    %c0_i32_0 = arith.constant 0 : i32
    %2 = arith.cmpi ne, %1, %c0_i32_0 : i32
    scf.if %2 {
      %c0_8 = arith.constant 0 : index
      %c0_9 = arith.constant 0 : index
      %11 = vector.load %arg2[%c0_8, %c0_9] : memref<16x128xf32, #tpu.memory_space<vmem>>, vector<16x128xf32>
      %cst_10 = arith.constant dense<0.000000e+00> : vector<16xf32>
      %12 = vector.multi_reduction <add>, %11, %cst_10 [1] : vector<16x128xf32> to vector<16xf32>
      %13 = vector.shape_cast %12 : vector<16xf32> to vector<16x1xf32>
      %cst_11 = arith.constant 1.280000e+02 : f32
      %14 = vector.broadcast %cst_11 : f32 to vector<16x1xf32>
      %15 = arith.divf %13, %14 : vector<16x1xf32>
      %16 = vector.broadcast %15 : vector<16x1xf32> to vector<16x128xf32>
      %17 = arith.subf %11, %16 : vector<16x128xf32>
      %18 = arith.mulf %17, %17 : vector<16x128xf32>
      %cst_12 = arith.constant dense<0.000000e+00> : vector<16xf32>
      %19 = vector.multi_reduction <add>, %18, %cst_12 [1] : vector<16x128xf32> to vector<16xf32>
      %20 = vector.shape_cast %19 : vector<16xf32> to vector<16x1xf32>
      %cst_13 = arith.constant 1.280000e+02 : f32
      %21 = vector.broadcast %cst_13 : f32 to vector<16x1xf32>
      %22 = arith.divf %20, %21 : vector<16x1xf32>
      %cst_14 = arith.constant 9.99999974E-6 : f32
      %23 = vector.broadcast %cst_14 : f32 to vector<16x1xf32>
      %24 = arith.addf %22, %23 : vector<16x1xf32>
      %25 = math.rsqrt %24 : vector<16x1xf32>
      %26 = vector.broadcast %25 : vector<16x1xf32> to vector<16x128xf32>
      %27 = arith.mulf %17, %26 : vector<16x128xf32>
      %c0_15 = arith.constant 0 : index
      %c0_16 = arith.constant 0 : index
      %28 = vector.load %arg3[%c0_15, %c0_16] : memref<1x128xf32, #tpu.memory_space<vmem>>, vector<1x128xf32>
      %29 = vector.broadcast %28 : vector<1x128xf32> to vector<16x128xf32>
      %30 = arith.mulf %27, %29 : vector<16x128xf32>
      %c0_17 = arith.constant 0 : index
      %c0_18 = arith.constant 0 : index
      %31 = vector.load %arg4[%c0_17, %c0_18] : memref<1x128xf32, #tpu.memory_space<vmem>>, vector<1x128xf32>
      %32 = vector.broadcast %31 : vector<1x128xf32> to vector<16x128xf32>
      %33 = arith.addf %30, %32 : vector<16x128xf32>
      %34 = arith.truncf %33 : vector<16x128xf32> to vector<16x128xbf16>
      %c0_19 = arith.constant 0 : index
      %c0_20 = arith.constant 0 : index
      %35 = vector.load %arg8[%c0_19, %c0_20] : memref<16x128xbf16, #tpu.memory_space<vmem>>, vector<16x128xbf16>
      tpu.vector_store %arg8[%c0_19, %c0_20], %34 {strides = array<i32>} : memref<16x128xbf16, #tpu.memory_space<vmem>>, vector<16x128xbf16>,
    } else {
    }
    %c0 = arith.constant 0 : index
    %c0_1 = arith.constant 0 : index
    %3 = vector.load %arg8[%c0, %c0_1] : memref<16x128xbf16, #tpu.memory_space<vmem>>, vector<16x128xbf16>
    %c0_2 = arith.constant 0 : index
    %c0_3 = arith.constant 0 : index
    %4 = vector.load %arg5[%c0_2, %c0_3] : memref<128x384xbf16, #tpu.memory_space<vmem>>, vector<128x384xbf16>
    %cst = arith.constant dense<0.000000e+00> : vector<16x384xf32>
    %5 = tpu.matmul %3, %4, %cst {dimension_numbers = #tpu.dot_dimension_numbers<[1], [0], [0], [1], [0, 0, 1, 1], [], []>} : vector<16x128xbf16>, vector<128x384xbf16>, vector<16x384xf32> -> vector<16x384xf32>
    %c0_4 = arith.constant 0 : index
    %c0_5 = arith.constant 0 : index
    %6 = vector.load %arg6[%c0_4, %c0_5] : memref<1x384xf32, #tpu.memory_space<vmem>>, vector<1x384xf32>
    %7 = vector.broadcast %6 : vector<1x384xf32> to vector<16x384xf32>
    %8 = arith.addf %5, %7 : vector<16x384xf32>
    %9 = arith.truncf %8 : vector<16x384xf32> to vector<16x384xbf16>
    %c0_6 = arith.constant 0 : index
    %c0_7 = arith.constant 0 : index
    %10 = vector.load %arg7[%c0_6, %c0_7] : memref<16x384xbf16, #tpu.memory_space<vmem>>, vector<16x384xbf16>
    tpu.vector_store %arg7[%c0_6, %c0_7], %9 {strides = array<i32>} : memref<16x384xbf16, #tpu.memory_space<vmem>>, vector<16x384xbf16>,
    return
  }
  func.func @transform_0(%arg0: i32, %arg1: i32) -> (i32, i32) {
    %c0_i32 = arith.constant 0 : i32
    %c0_i32_0 = arith.constant 0 : i32
    return %arg0, %c0_i32 : i32, i32
  }
  func.func @transform_1(%arg0: i32, %arg1: i32) -> (i32, i32) {
    %c0_i32 = arith.constant 0 : i32
    %c0_i32_0 = arith.constant 0 : i32
    %c0_i32_1 = arith.constant 0 : i32
    return %c0_i32, %c0_i32_0 : i32, i32
  }
  func.func @transform_2(%arg0: i32, %arg1: i32) -> (i32, i32) {
    %c0_i32 = arith.constant 0 : i32
    %c0_i32_0 = arith.constant 0 : i32
    %c0_i32_1 = arith.constant 0 : i32
    return %c0_i32, %c0_i32_0 : i32, i32
  }
  func.func @transform_3(%arg0: i32, %arg1: i32) -> (i32, i32) {
    %c0_i32 = arith.constant 0 : i32
    %c0_i32_0 = arith.constant 0 : i32
    return %c0_i32, %arg1 : i32, i32
  }
  func.func @transform_4(%arg0: i32, %arg1: i32) -> (i32, i32) {
    %c0_i32 = arith.constant 0 : i32
    %c0_i32_0 = arith.constant 0 : i32
    return %c0_i32, %arg1 : i32, i32
  }
  func.func @transform_5(%arg0: i32, %arg1: i32) -> (i32, i32) {
    %c0_i32 = arith.constant 0 : i32
    return %arg0, %arg1 : i32, i32
  }
}

</mosaic_0001>

<llo_original>
// kernel: tpu_custom_call.1
$region0: #{tpu_custom_call.1}
  #allocation0 [shape = 'u32[]', space=smem, size = 0x4, offset = 0x4, fixed_abs, tag = 'smem constant byte address 0x4 - core index']
  #allocation1 [shape = 'u32[144,128]{1,0:T(1,128)}', space=vmem, size = 0x12000, scoped, tag = 'internal scratch']
  #allocation2 [shape = 'bf16[16,128]{1,0:T(16,128)(2,1)}', space=vmem, size = 0x1000, scoped, tag = 'scratch operand']
  %s0 = inlined_call_operand.hbm [shape: f32[32,128], index: 0, kind: input, shape index: {}]
  %s1 = inlined_call_operand.vmem [shape: f32[1,128], index: 1, kind: input, shape index: {}]
  %s2 = inlined_call_operand.vmem [shape: f32[1,128], index: 2, kind: input, shape index: {}]
  %s3 = inlined_call_operand.hbm [shape: bf16[128,384], index: 3, kind: input, shape index: {}]
  %s4 = inlined_call_operand.vmem [shape: f32[1,384], index: 4, kind: input, shape index: {}]
  %s5 = inlined_call_operand.hbm [shape: bf16[32,384], index: 5, kind: output, shape index: {}]
  %s6 = sld [smem:[#allocation0]]
  $region65: #{tpu_custom_call.1} parent=0
    _
  %s8 = ssub.s32 1, %s6
  %s9 = scalar_select 0, %s8, %s6
  $region1: #{tpu_custom_call.1} parent=0
    #allocation3 [shape = 'u8[16384]{0}', space=vmem, size = 0x4000, scoped, tag = 'input window, operand 0']
    #allocation4 [shape = 's32[2]{0}', space=sflag, size = 0x8, scoped, tag = 'scoped memory for tpu_custom_call.1']
    #allocation5 [shape = 's32[2]{0}', space=sflag, size = 0x8, scoped, tag = 'scoped memory for tpu_custom_call.1']
    #allocation6 [shape = 'u8[98304]{0}', space=vmem, size = 0x18000, scoped, tag = 'input window, operand 3, single buffered']
    #allocation7 [shape = 's32[1]{0}', space=sflag, size = 0x4, scoped, tag = 'scoped memory for tpu_custom_call.1']
    #allocation8 [shape = 'u8[24576]{0}', space=vmem, size = 0x6000, scoped, tag = 'output window, operand 0']
    %10 = vsyncpa [#allocation4], 0
    %s11 = scalar_lea.sflag [#allocation4], 1
    %12 = vsyncpa %s11, 0
    %13 = vsyncpa [#allocation7], 0
    %14 = vsyncpa [#allocation5], 0
    %s15 = scalar_lea.sflag [#allocation5], 1
    %16 = vsyncpa %s15, 0
    loop: start=0, step=1, limit=4
    $region2: #{tpu_custom_call.1} parent=1 // loop_pre_header
      _
    $region3: #{tpu_custom_call.1} parent=1 // loop_header
      %s18 = sphi 0, %s22
      %p19 = scmp.ge.s32.totalorder %s18, 4
      %s25 = sphi 0, %s37
      %s26 = sphi 0, %s33
      %s27 = sphi 0, %s25
      %s28 = sphi 0, %s26
      %s29 = sphi 0, %s27
      %s30 = sphi 0, %s28
      %s40 = sphi 0, %s42
      %s43 = sphi 0, %s40
      %s44 = sphi 0, %s43
      %s60 = sphi 0, %s44
      %s64 = sphi 0, %s64
      %s66 = sphi 0, %s64
      %s67 = sphi 0, %s66
      %s81 = sphi 0, %s67
      %s85 = sphi 0, %s85
      %s87 = sphi 0, %s85
      %s88 = sphi 0, %s87
      %s102 = sphi 0, %s88
      %s108 = sphi 0, %s110
      %s111 = sphi 0, %s108
      %s112 = sphi 0, %s111
      %s128 = sphi 0, %s112
      %s134 = sphi 0, %s136
      %s137 = sphi 0, %s134
      %s138 = sphi 0, %s137
      %s154 = sphi 0, %s138
      %s162 = sphi 0, %s164
      %s165 = sphi 0, %s162
      %s166 = sphi 0, %s165
      %s182 = sphi 0, %s166
    $region4: #{tpu_custom_call.1} parent=1 // loop_header_branch
      %21 = sbr.rel (%p19) target = $region8
    $region5: #{tpu_custom_call.1} parent=1 // loop_body
      %s23 = ssub.s32 %s18, 1
      %s24 = ssub.s32 %s18, 2
      %s31 = sadd.s32 1, %s26
      %p32 = scmp.ge.s32.totalorder %s31, 1
      %s33 = scalar_select %p32, 0, %s31
      %s34 = sadd.s32 1, %s25
      %s35 = scalar_select %p32, %s34, %s25
      %p36 = scmp.ge.s32.totalorder %s35, 2
      %s37 = scalar_select %p36, 0, %s35
      %s38 = ssub.s32 %s25, %s37
      %p39 = scmp.eq.s32.totalorder %s38, 0
      %s41 = sadd.s32 %s40, 1
      %s42 = scalar_select %p39, %s40, %s41
      %p45 = pneg %p39
      %p46 = scmp.eq.s32.totalorder %s18, 1
      %p47 = por %p45, %p46
      %p48 = scmp.ne.s32.totalorder %s40, %s43
      %p49 = scmp.eq.s32.totalorder %s18, 0
      %p50 = por %p48, %p49
      %p51 = scmp.ne.s32.totalorder %s40, %s43
      %p52 = scmp.eq.s32.totalorder %s23, 1
      %p53 = por %p51, %p52
      %p54 = scmp.ne.s32.totalorder %s43, %s44
      %p55 = scmp.eq.s32.totalorder %s23, 0
      %p56 = por %p54, %p55
      %p57 = scmp.ne.s32.totalorder %s43, %s44
      %p58 = scmp.eq.s32.totalorder %s24, 1
      %p59 = por %p57, %p58
      %p61 = scmp.ne.s32.totalorder %s44, %s60
      %p62 = scmp.eq.s32.totalorder %s24, 0
      %p63 = por %p61, %p62
      %s65 = sadd.s32 %s64, 1
      %p68 = scmp.eq.s32.totalorder %s18, 1
      %p69 = scmp.ne.s32.totalorder %s64, %s66
      %p70 = scmp.eq.s32.totalorder %s18, 0
      %p71 = por %p69, %p70
      %p72 = scmp.ne.s32.totalorder %s64, %s66
      %p73 = scmp.eq.s32.totalorder %s23, 1
      %p74 = por %p72, %p73
      %p75 = scmp.ne.s32.totalorder %s66, %s67
      %p76 = scmp.eq.s32.totalorder %s23, 0
      %p77 = por %p75, %p76
      %p78 = scmp.ne.s32.totalorder %s66, %s67
      %p79 = scmp.eq.s32.totalorder %s24, 1
      %p80 = por %p78, %p79
      %p82 = scmp.ne.s32.totalorder %s67, %s81
      %p83 = scmp.eq.s32.totalorder %s24, 0
      %p84 = por %p82, %p83
      %s86 = sadd.s32 %s85, 1
      %p89 = scmp.eq.s32.totalorder %s18, 1
      %p90 = scmp.ne.s32.totalorder %s85, %s87
      %p91 = scmp.eq.s32.totalorder %s18, 0
      %p92 = por %p90, %p91
      %p93 = scmp.ne.s32.totalorder %s85, %s87
      %p94 = scmp.eq.s32.totalorder %s23, 1
      %p95 = por %p93, %p94
      %p96 = scmp.ne.s32.totalorder %s87, %s88
      %p97 = scmp.eq.s32.totalorder %s23, 0
      %p98 = por %p96, %p97
      %p99 = scmp.ne.s32.totalorder %s87, %s88
      %p100 = scmp.eq.s32.totalorder %s24, 1
      %p101 = por %p99, %p100
      %p103 = scmp.ne.s32.totalorder %s88, %s102
      %p104 = scmp.eq.s32.totalorder %s24, 0
      %p105 = por %p103, %p104
      %s106 = ssub.s32 %s26, %s33
      %p107 = scmp.eq.s32.totalorder %s106, 0
      %s109 = sadd.s32 %s108, 1
      %s110 = scalar_select %p107, %s108, %s109
      %p113 = pneg %p107
      %p114 = scmp.eq.s32.totalorder %s18, 1
      %p115 = por %p113, %p114
      %p116 = scmp.ne.s32.totalorder %s108, %s111
      %p117 = scmp.eq.s32.totalorder %s18, 0
      %p118 = por %p116, %p117
      %p119 = scmp.ne.s32.totalorder %s108, %s111
      %p120 = scmp.eq.s32.totalorder %s23, 1
      %p121 = por %p119, %p120
      %p122 = scmp.ne.s32.totalorder %s111, %s112
      %p123 = scmp.eq.s32.totalorder %s23, 0
      %p124 = por %p122, %p123
      %p125 = scmp.ne.s32.totalorder %s111, %s112
      %p126 = scmp.eq.s32.totalorder %s24, 1
      %p127 = por %p125, %p126
      %p129 = scmp.ne.s32.totalorder %s112, %s128
      %p130 = scmp.eq.s32.totalorder %s24, 0
      %p131 = por %p129, %p130
      %s132 = ssub.s32 %s26, %s33
      %p133 = scmp.eq.s32.totalorder %s132, 0
      %s135 = sadd.s32 %s134, 1
      %s136 = scalar_select %p133, %s134, %s135
      %p139 = pneg %p133
      %p140 = scmp.eq.s32.totalorder %s18, 1
      %p141 = por %p139, %p140
      %p142 = scmp.ne.s32.totalorder %s134, %s137
      %p143 = scmp.eq.s32.totalorder %s18, 0
      %p144 = por %p142, %p143
      %p145 = scmp.ne.s32.totalorder %s134, %s137
      %p146 = scmp.eq.s32.totalorder %s23, 1
      %p147 = por %p145, %p146
      %p148 = scmp.ne.s32.totalorder %s137, %s138
      %p149 = scmp.eq.s32.totalorder %s23, 0
      %p150 = por %p148, %p149
      %p151 = scmp.ne.s32.totalorder %s137, %s138
      %p152 = scmp.eq.s32.totalorder %s24, 1
      %p153 = por %p151, %p152
      %p155 = scmp.ne.s32.totalorder %s138, %s154
      %p156 = scmp.eq.s32.totalorder %s24, 0
      %p157 = por %p155, %p156
      %s158 = ssub.s32 %s25, %s37
      %s159 = ssub.s32 %s26, %s33
      %s160 = sor.u32 %s158, %s159
      %p161 = scmp.eq.s32.totalorder %s160, 0
      %s163 = sadd.s32 %s162, 1
      %s164 = scalar_select %p161, %s162, %s163
      %p167 = pneg %p161
      %p168 = scmp.eq.s32.totalorder %s18, 1
      %p169 = por %p167, %p168
      %p170 = scmp.ne.s32.totalorder %s162, %s165
      %p171 = scmp.eq.s32.totalorder %s18, 0
      %p172 = por %p170, %p171
      %p173 = scmp.ne.s32.totalorder %s162, %s165
      %p174 = scmp.eq.s32.totalorder %s23, 1
      %p175 = por %p173, %p174
      %p176 = scmp.ne.s32.totalorder %s165, %s166
      %p177 = scmp.eq.s32.totalorder %s23, 0
      %p178 = por %p176, %p177
      %p179 = scmp.ne.s32.totalorder %s165, %s166
      %p180 = scmp.eq.s32.totalorder %s24, 1
      %p181 = por %p179, %p180
      %p183 = scmp.ne.s32.totalorder %s166, %s182
      %p184 = scmp.eq.s32.totalorder %s24, 0
      %p185 = por %p183, %p184
      %p186 = scmp.le.s32.totalorder 1, %s18
      %p187 = scmp.lt.s32.totalorder %s18, 3
      %p188 = pnand %p186, %p187
      %p189 = pneg %p188
      // Predicated region
      $region9: #{tpu_custom_call.1} parent=5 // pred_check
        _
      $region10: #{tpu_custom_call.1} parent=5 // pred_check_branch
        %191 = sbr.rel (%p188) target = $region12
      $region11: #{tpu_custom_call.1} parent=5 // pred_region
        %s192 = ssub.s32 %s18, 1
        // Predicated region
        $region13: #{tpu_custom_call.1} parent=11 // pred_check
          %p193 = pneg %p77
        $region14: #{tpu_custom_call.1} parent=11 // pred_check_branch
          %195 = sbr.rel (%p193) target = $region16
        $region15: #{tpu_custom_call.1} parent=11 // pred_region
          _
        $region16: #{tpu_custom_call.1} parent=11 // pred_fallthru
          _
        // Predicated region
        $region17: #{tpu_custom_call.1} parent=11 // pred_check
          %p196 = pneg %p98
        $region18: #{tpu_custom_call.1} parent=11 // pred_check_branch
          %198 = sbr.rel (%p196) target = $region20
        $region19: #{tpu_custom_call.1} parent=11 // pred_region
          _
        $region20: #{tpu_custom_call.1} parent=11 // pred_fallthru
          _
        // Predicated region
        $region21: #{tpu_custom_call.1} parent=11 // pred_check
          %p199 = pneg %p124
        $region22: #{tpu_custom_call.1} parent=11 // pred_check_branch
          %201 = sbr.rel (%p199) target = $region24
        $region23: #{tpu_custom_call.1} parent=11 // pred_region
          %s202 = smul.u32 3, %s28
          %s204 = ssub.s32 3072, 3072
          %205 = vsyncadd [#allocation7], %s204
          %s206 = smul.addr %s202, 64
          %s207 = scalar_lea.hbm %s3, %s206
          %s208 = sshll.u32 [#allocation6], 4
          %s209 = int_to_ptr.vmem [resolvable:$true] %s208
          %214 = dma.hbm_to_vmem [thread:$0]  %s207, 3072, %s209, [#allocation7], 192, 192, 12
        $region24: #{tpu_custom_call.1} parent=11 // pred_fallthru
          _
        // Predicated region
        $region25: #{tpu_custom_call.1} parent=11 // pred_check
          %p215 = pneg %p150
        $region26: #{tpu_custom_call.1} parent=11 // pred_check_branch
          %217 = sbr.rel (%p215) target = $region28
        $region27: #{tpu_custom_call.1} parent=11 // pred_region
          %s218 = smul.u32 3, %s28
          %p219 = scmp.lt.s32.totalorder %s218, 2
          %s220 = scalar_select %p219, %s218, 2
          %s221 = scalar_lea.vmem %s4, %s220
          %s222 = smul.u32 3, %s28
        $region28: #{tpu_custom_call.1} parent=11 // pred_fallthru
          _
      $region12: #{tpu_custom_call.1} parent=5 // pred_fallthru
        _
      %p223 = scmp.lt.s32.totalorder %s18, 2
      // Predicated region
      $region29: #{tpu_custom_call.1} parent=5 // pred_check
        %p224 = pneg %p223
      $region30: #{tpu_custom_call.1} parent=5 // pred_check_branch
        %226 = sbr.rel (%p224) target = $region32
      $region31: #{tpu_custom_call.1} parent=5 // pred_region
        // Predicated region
        $region33: #{tpu_custom_call.1} parent=31 // pred_check
          %p227 = pneg %p50
        $region34: #{tpu_custom_call.1} parent=31 // pred_check_branch
          %229 = sbr.rel (%p227) target = $region36
        $region35: #{tpu_custom_call.1} parent=31 // pred_region
          %s230 = sand.u32 %s40, 1
          %s231 = scalar_lea.sflag [#allocation4], %s230
          %s232 = sand.u32 %s40, 1
          %s233 = smul.addr %s232, 16
          %s234 = scalar_lea.vmem [#allocation3], %s233
          %s235 = smul.u32 2, %s25
          %s237 = ssub.s32 256, 256
          %238 = vsyncadd %s231, %s237
          %s239 = smul.addr %s235, 128
          %s240 = scalar_lea.hbm %s0, %s239
          %s241 = sshll.u32 %s234, 4
          %s242 = int_to_ptr.vmem [resolvable:$true] %s241
          %247 = dma.hbm_to_vmem [thread:$0]  %s240, 256, %s242, %s231, 128, 128, 8
        $region36: #{tpu_custom_call.1} parent=31 // pred_fallthru
          _
      $region32: #{tpu_custom_call.1} parent=5 // pred_fallthru
        _
      %p248 = scmp.le.s32.totalorder 1, %s18
      %p249 = scmp.lt.s32.totalorder %s18, 3
      %p250 = pnand %p248, %p249
      %p251 = pneg %p250
      // Predicated region
      $region37: #{tpu_custom_call.1} parent=5 // pred_check
        _
      $region38: #{tpu_custom_call.1} parent=5 // pred_check_branch
        %253 = sbr.rel (%p250) target = $region40
      $region39: #{tpu_custom_call.1} parent=5 // pred_region
        %s254 = ssub.s32 %s18, 1
        %s255 = sand.u32 %s43, 1
        %s256 = scalar_lea.sflag [#allocation4], %s255
        %s257 = sand.u32 %s43, 1
        %s258 = smul.addr %s257, 16
        %s259 = scalar_lea.vmem [#allocation3], %s258
        // Predicated region
        $region41: #{tpu_custom_call.1} parent=39 // pred_check
          %p260 = pneg %p56
        $region42: #{tpu_custom_call.1} parent=39 // pred_check_branch
          %262 = sbr.rel (%p260) target = $region44
        $region43: #{tpu_custom_call.1} parent=39 // pred_region
          %263 = dma.done %s256, 256
        $region44: #{tpu_custom_call.1} parent=39 // pred_fallthru
          _
        // Predicated region
        $region45: #{tpu_custom_call.1} parent=39 // pred_check
          %p264 = pneg %p124
        $region46: #{tpu_custom_call.1} parent=39 // pred_check_branch
          %266 = sbr.rel (%p264) target = $region48
        $region47: #{tpu_custom_call.1} parent=39 // pred_region
          %267 = dma.done [#allocation7], 3072
        $region48: #{tpu_custom_call.1} parent=39 // pred_fallthru
          _
        %s268 = sand.u32 %s43, 1
        %s269 = scalar_lea.sflag [#allocation4], %s268
        %s270 = sand.u32 %s43, 1
        %s271 = smul.addr %s270, 16
        %s272 = scalar_lea.vmem [#allocation3], %s271
        %p273 = pneg %p56
        %p274 = pneg %p53
        %p275 = pneg %p77
        %p276 = pneg %p74
        %p277 = pneg %p98
        %p278 = pneg %p95
        %p279 = pneg %p124
        %p280 = pneg %p121
        %s281 = smul.u32 3, %s28
        %p282 = scmp.lt.s32.totalorder %s281, 2
        %s283 = scalar_select %p282, %s281, 2
        %s284 = scalar_lea.vmem %s4, %s283
        %p285 = pneg %p150
        %p286 = pneg %p147
        %p287 = pneg %p178
        %p288 = pneg %p175
        %s289 = sand.u32 %s165, 1
        %s290 = scalar_lea.sflag [#allocation5], %s289
        %s291 = sand.u32 %s165, 1
        %s292 = smul.addr %s291, 24
        %s293 = scalar_lea.vmem [#allocation8], %s292
        %s294 = smul.u32 2, %s27
        %s295 = smul.u32 3, %s28
        %s296 = smul.u32 3, %s28
        %p297 = scmp.lt.s32.totalorder %s296, 2
        %s298 = scalar_select %p297, %s296, 2
        %s299 = scalar_lea.vmem %s4, %s298
        %s300 = smul.u32 3, %s28
        %s301 = smul.u32 2, %s27
        %s302 = smul.u32 3, %s28
        %p304 = scmp.eq.s32.totalorder %s28, 0
        // Predicated region
        $region49: #{tpu_custom_call.1} parent=39 // pred_check
          %p305 = pneg %p304
        $region50: #{tpu_custom_call.1} parent=39 // pred_check_branch
          %307 = sbr.rel (%p305) target = $region52
        $region51: #{tpu_custom_call.1} parent=39 // pred_region
          %v308 = vld [vmem:[%s259] sm:$0xff]
          %v309 = vld [vmem:[%s259 + $0x8] sm:$0xff]
          %310 = vadd.xlane.f32.xlu0 %v308
          %v311 = vpop.xlane.xlu0 %310
          %312 = vadd.xlane.f32.xlu0 %v309
          %v313 = vpop.xlane.xlu0 %312
          %v314 = vrcp.pop 128.0
          %v315 = vmul.f32 %v311, %v314
          %v316 = vmul.f32 %v313, %v314
          %v317 = vsub.f32 %v308, %v315
          %v318 = vsub.f32 %v309, %v316
          %v319 = vmul.f32 %v317, %v317
          %v320 = vmul.f32 %v318, %v318
          %321 = vadd.xlane.f32.xlu0 %v319
          %v322 = vpop.xlane.xlu0 %321
          %323 = vadd.xlane.f32.xlu0 %v320
          %v324 = vpop.xlane.xlu0 %323
          %v325 = vmul.f32 %v322, %v314
          %v326 = vmul.f32 %v324, %v314
          %v327 = vadd.f32 %v325, 1e-05
          %v328 = vadd.f32 %v326, 1e-05
          %v329 = vrsqrt.pop %v327
          %v330 = vrsqrt.pop %v328
          %v331 = vmul.f32 %v317, %v329
          %v332 = vmul.f32 %v318, %v330
          %v333 = vld [vmem:[%s1] sm:$0x1]
          %v335 = vlaneseq
          %v336 = vshrl.u32 %v335, 7
          %v337 = vsub.s32 0, %v336
          %v338 = vrot.slane %v333, %v337
          %v340 = vmul.f32 %v331, %v338
          %v341 = vmul.f32 %v332, %v338
          %v342 = vld [vmem:[%s2] sm:$0x1]
          %v344 = vlaneseq
          %v345 = vshrl.u32 %v344, 7
          %v346 = vsub.s32 0, %v345
          %v347 = vrot.slane %v342, %v346
          %v349 = vadd.f32 %v340, %v347
          %v350 = vadd.f32 %v341, %v347
          %v351 = vpack.c.bf16 %v350, %v349
          %352 = vst [vmem:[#allocation2] sm:$0xff] %v351
        $region52: #{tpu_custom_call.1} parent=39 // pred_fallthru
          _
        %v353 = vld [vmem:[#allocation2] sm:$0xff]
        %v354 = vld [vmem:[#allocation6] sm:$0xff]
        %v355 = vld [vmem:[#allocation6 + $0x8] sm:$0xf]
        %v356 = vld [vmem:[#allocation6 + $0xc] sm:$0xff]
        %v357 = vld [vmem:[#allocation6 + $0x14] sm:$0xf]
        %v358 = vld [vmem:[#allocation6 + $0x18] sm:$0xff]
        %v359 = vld [vmem:[#allocation6 + $0x20] sm:$0xf]
        %v360 = vld [vmem:[#allocation6 + $0x24] sm:$0xff]
        %v361 = vld [vmem:[#allocation6 + $0x2c] sm:$0xf]
        %v362 = vld [vmem:[#allocation6 + $0x30] sm:$0xff]
        %v363 = vld [vmem:[#allocation6 + $0x38] sm:$0xf]
        %v364 = vld [vmem:[#allocation6 + $0x3c] sm:$0xff]
        %v365 = vld [vmem:[#allocation6 + $0x44] sm:$0xf]
        %v366 = vld [vmem:[#allocation6 + $0x48] sm:$0xff]
        %v367 = vld [vmem:[#allocation6 + $0x50] sm:$0xf]
        %v368 = vld [vmem:[#allocation6 + $0x54] sm:$0xff]
        %v369 = vld [vmem:[#allocation6 + $0x5c] sm:$0xf]
        %v370 = vld [vmem:[#allocation6 + $0x60] sm:$0xff]
        %v371 = vld [vmem:[#allocation6 + $0x68] sm:$0xf]
        %v372 = vld [vmem:[#allocation6 + $0x6c] sm:$0xff]
        %v373 = vld [vmem:[#allocation6 + $0x74] sm:$0xf]
        %v374 = vld [vmem:[#allocation6 + $0x78] sm:$0xff]
        %v375 = vld [vmem:[#allocation6 + $0x80] sm:$0xf]
        %v376 = vld [vmem:[#allocation6 + $0x84] sm:$0xff]
        %v377 = vld [vmem:[#allocation6 + $0x8c] sm:$0xf]
        %v378 = vld [vmem:[#allocation6 + $0x90] sm:$0xff]
        %v379 = vld [vmem:[#allocation6 + $0x98] sm:$0xf]
        %v380 = vld [vmem:[#allocation6 + $0x9c] sm:$0xff]
        %v381 = vld [vmem:[#allocation6 + $0xa4] sm:$0xf]
        %v382 = vld [vmem:[#allocation6 + $0xa8] sm:$0xff]
        %v383 = vld [vmem:[#allocation6 + $0xb0] sm:$0xf]
        %v384 = vld [vmem:[#allocation6 + $0xb4] sm:$0xff]
        %v385 = vld [vmem:[#allocation6 + $0xbc] sm:$0xf]
        %v386 = vld [vmem:[%s299] sm:$0x7]
        %v388 = vlaneseq
        %v389 = vshrl.u32 %v388, 7
        %v390 = vsub.s32 0, %v389
        %v391 = vrot.slane %v386, %v390
        %v392 = vlaneseq
        %v393 = vshrl.u32 %v392, 7
        %v394 = vsub.s32 1, %v393
        %v395 = vrot.slane %v386, %v394
        %v396 = vlaneseq
        %v397 = vshrl.u32 %v396, 7
        %v398 = vsub.s32 2, %v397
        %v399 = vrot.slane %v386, %v398
        %v435 = vunpack.c.l.b16 %v354
        %v436 = vunpack.c.h.b16 %v354
        %v437 = vunpack.c.l.b16 %v355
        %v438 = vunpack.c.l.b16 %v356
        %v439 = vunpack.c.h.b16 %v356
        %v440 = vunpack.c.l.b16 %v357
        %v441 = vunpack.c.l.b16 %v358
        %v442 = vunpack.c.h.b16 %v358
        %v443 = vunpack.c.l.b16 %v359
        %v444 = vunpack.c.l.b16 %v360
        %v445 = vunpack.c.h.b16 %v360
        %v446 = vunpack.c.l.b16 %v361
        %v447 = vunpack.c.l.b16 %v362
        %v448 = vunpack.c.h.b16 %v362
        %v449 = vunpack.c.l.b16 %v363
        %v450 = vunpack.c.l.b16 %v364
        %v451 = vunpack.c.h.b16 %v364
        %v452 = vunpack.c.l.b16 %v365
        %v453 = vunpack.c.l.b16 %v366
        %v454 = vunpack.c.h.b16 %v366
        %v455 = vunpack.c.l.b16 %v367
        %v456 = vunpack.c.l.b16 %v368
        %v457 = vunpack.c.h.b16 %v368
        %v458 = vunpack.c.l.b16 %v369
        %v459 = vunpack.c.l.b16 %v370
        %v460 = vunpack.c.h.b16 %v370
        %v461 = vunpack.c.l.b16 %v371
        %v462 = vunpack.c.l.b16 %v372
        %v463 = vunpack.c.h.b16 %v372
        %v464 = vunpack.c.l.b16 %v373
        %v465 = vunpack.c.l.b16 %v374
        %v466 = vunpack.c.h.b16 %v374
        %v467 = vunpack.c.l.b16 %v375
        %v468 = vunpack.c.l.b16 %v376
        %v469 = vunpack.c.h.b16 %v376
        %v470 = vunpack.c.l.b16 %v377
        %v471 = vunpack.c.l.b16 %v378
        %v472 = vunpack.c.h.b16 %v378
        %v473 = vunpack.c.l.b16 %v379
        %v474 = vunpack.c.l.b16 %v380
        %v475 = vunpack.c.h.b16 %v380
        %v476 = vunpack.c.l.b16 %v381
        %v477 = vunpack.c.l.b16 %v382
        %v478 = vunpack.c.h.b16 %v382
        %v479 = vunpack.c.l.b16 %v383
        %v480 = vunpack.c.l.b16 %v384
        %v481 = vunpack.c.h.b16 %v384
        %v482 = vunpack.c.l.b16 %v385
        %v483 = vpack.c.b16 %v438, %v435
        %v484 = vpack.c.b16 %v439, %v436
        %v485 = vpack.c.b16 %v440, %v437
        %v486 = vpack.c.b16 %v444, %v441
        %v487 = vpack.c.b16 %v445, %v442
        %v488 = vpack.c.b16 %v446, %v443
        %v489 = vpack.c.b16 %v450, %v447
        %v490 = vpack.c.b16 %v451, %v448
        %v491 = vpack.c.b16 %v452, %v449
        %v492 = vpack.c.b16 %v456, %v453
        %v493 = vpack.c.b16 %v457, %v454
        %v494 = vpack.c.b16 %v458, %v455
        %v495 = vpack.c.b16 %v462, %v459
        %v496 = vpack.c.b16 %v463, %v460
        %v497 = vpack.c.b16 %v464, %v461
        %v498 = vpack.c.b16 %v468, %v465
        %v499 = vpack.c.b16 %v469, %v466
        %v500 = vpack.c.b16 %v470, %v467
        %v501 = vpack.c.b16 %v474, %v471
        %v502 = vpack.c.b16 %v475, %v472
        %v503 = vpack.c.b16 %v476, %v473
        %v504 = vpack.c.b16 %v480, %v477
        %v505 = vpack.c.b16 %v481, %v478
        %v506 = vpack.c.b16 %v482, %v479
        %531 = vmatprep.subr.bf16.mxu0 %v484
        %532 = vmatpush1.bf16.msra.mxu0 %v483
        %533 = vmatprep.subr.bf16.mxu0 %v487
        %534 = vmatpush1.bf16.msra.mxu0 %v486
        %535 = vmatprep.subr.bf16.mxu0 %v490
        %536 = vmatpush1.bf16.msra.mxu0 %v489
        %537 = vmatprep.subr.bf16.mxu0 %v493
        %538 = vmatpush1.bf16.msra.mxu0 %v492
        %539 = vmatprep.subr.bf16.mxu0 %v496
        %540 = vmatpush1.bf16.msra.mxu0 %v495
        %541 = vmatprep.subr.bf16.mxu0 %v499
        %542 = vmatpush1.bf16.msra.mxu0 %v498
        %543 = vmatprep.subr.bf16.mxu0 %v502
        %544 = vmatpush1.bf16.msra.mxu0 %v501
        %545 = vmatprep.subr.bf16.mxu0 %v505
        %546 = vmatpush1.bf16.msra.mxu0 %v504
        %547 = vmatprep.subr.bf16.mxu0 0
        %548 = vmatpush1.bf16.msra.mxu0 0
        %549 = vmatprep.subr.bf16.mxu0 0
        %550 = vmatpush1.bf16.msra.mxu0 0
        %551 = vmatprep.subr.bf16.mxu0 0
        %552 = vmatpush1.bf16.msra.mxu0 0
        %553 = vmatprep.subr.bf16.mxu0 0
        %554 = vmatpush1.bf16.msra.mxu0 0
        %555 = vmatprep.subr.bf16.mxu0 0
        %556 = vmatpush1.bf16.msra.mxu0 0
        %557 = vmatprep.subr.bf16.mxu0 0
        %558 = vmatpush1.bf16.msra.mxu0 0
        %559 = vmatprep.subr.bf16.mxu0 0
        %560 = vmatpush1.bf16.msra.mxu0 0
        %561 = vmatprep.subr.bf16.mxu0 0
        %562 = vmatpush1.bf16.msra.mxu0 0
        %563 = vmatprep.mubr.bf16.mxu0 0
        %564 = vmatmul.mubr.bf16.gmra.mrb[0].mxu0 %v353
        %v565 = vpop.f32.mrb[0].mxu0
        %v566 = vadd.f32 %v391, %v565
        %v567 = vpop.f32.mrb[0].mxu0
        %v568 = vadd.f32 %v395, %v567
        %v569 = vpop.f32.mrb[0].mxu0
        %v570 = vadd.f32 %v391, %v569
        %v571 = vpop.f32.mrb[0].mxu0
        %v572 = vadd.f32 %v395, %v571
        %573 = vdwg.mxu0
        %574 = vmatprep.subr.bf16.mxu0 0
        %575 = vmatpush1.bf16.msra.mxu0 %v485
        %576 = vmatprep.subr.bf16.mxu0 0
        %577 = vmatpush1.bf16.msra.mxu0 %v488
        %578 = vmatprep.subr.bf16.mxu0 0
        %579 = vmatpush1.bf16.msra.mxu0 %v491
        %580 = vmatprep.subr.bf16.mxu0 0
        %581 = vmatpush1.bf16.msra.mxu0 %v494
        %582 = vmatprep.subr.bf16.mxu0 0
        %583 = vmatpush1.bf16.msra.mxu0 %v497
        %584 = vmatprep.subr.bf16.mxu0 0
        %585 = vmatpush1.bf16.msra.mxu0 %v500
        %586 = vmatprep.subr.bf16.mxu0 0
        %587 = vmatpush1.bf16.msra.mxu0 %v503
        %588 = vmatprep.subr.bf16.mxu0 0
        %589 = vmatpush1.bf16.msra.mxu0 %v506
        %590 = vmatprep.subr.bf16.mxu0 0
        %591 = vmatpush1.bf16.msra.mxu0 0
        %592 = vmatprep.subr.bf16.mxu0 0
        %593 = vmatpush1.bf16.msra.mxu0 0
        %594 = vmatprep.subr.bf16.mxu0 0
        %595 = vmatpush1.bf16.msra.mxu0 0
        %596 = vmatprep.subr.bf16.mxu0 0
        %597 = vmatpush1.bf16.msra.mxu0 0
        %598 = vmatprep.subr.bf16.mxu0 0
        %599 = vmatpush1.bf16.msra.mxu0 0
        %600 = vmatprep.subr.bf16.mxu0 0
        %601 = vmatpush1.bf16.msra.mxu0 0
        %602 = vmatprep.subr.bf16.mxu0 0
        %603 = vmatpush1.bf16.msra.mxu0 0
        %604 = vmatprep.subr.bf16.mxu0 0
        %605 = vmatpush1.bf16.msra.mxu0 0
        %606 = vmatprep.mubr.bf16.mxu0 0
        %607 = vmatmul.mubr.bf16.gmra.mrb[0].mxu0 %v353
        %v608 = vpop.f32.mrb[0].mxu0
        %v609 = vadd.f32 %v399, %v608
        %v610 = vpop.f32.mrb[0].mxu0
        %v611 = vpop.f32.mrb[0].mxu0
        %v612 = vadd.f32 %v399, %v611
        %v613 = vpop.f32.mrb[0].mxu0
        %614 = vdwg.mxu0
        %v615 = vpack.c.bf16 %v570, %v566
        %v616 = vpack.c.bf16 %v572, %v568
        %v617 = vpack.c.bf16 %v612, %v609
        %v621 = vunpack.c.l.b16 %v615
        %v622 = vunpack.c.l.b16 %v616
        %v623 = vunpack.c.l.b16 %v617
        %v624 = vunpack.c.h.b16 %v615
        %v625 = vunpack.c.h.b16 %v616
        %v626 = vunpack.c.h.b16 %v617
        %v627 = vpack.c.b16 %v622, %v621
        %v628 = vpack.c.b16 %v623, %v623
        %v629 = vpack.c.b16 %v625, %v624
        %v630 = vpack.c.b16 %v626, %v626
        %635 = vst [vmem:[%s293] sm:$0xff] %v627
        %636 = vst [vmem:[%s293 + $0x8] sm:$0xf] %v628
        %637 = vst [vmem:[%s293 + $0xc] sm:$0xff] %v629
        %638 = vst [vmem:[%s293 + $0x14] sm:$0xf] %v630
        %s639 = sand.u32 %s165, 1
        %s640 = scalar_lea.sflag [#allocation5], %s639
        %s641 = sand.u32 %s165, 1
        %s642 = smul.addr %s641, 24
        %s643 = scalar_lea.vmem [#allocation8], %s642
        // Predicated region
        $region53: #{tpu_custom_call.1} parent=39 // pred_check
          %p644 = pneg %p175
        $region54: #{tpu_custom_call.1} parent=39 // pred_check_branch
          %646 = sbr.rel (%p644) target = $region56
        $region55: #{tpu_custom_call.1} parent=39 // pred_region
          %s647 = smul.u32 2, %s27
          %s648 = smul.u32 3, %s28
          %s650 = ssub.s32 384, 384
          %651 = vsyncadd %s640, %s650
          %s652 = smul.addr %s647, 3
          %s653 = sadd.s32 %s648, %s652
          %s654 = smul.addr %s653, 64
          %s655 = scalar_lea.hbm %s5, %s654
          %s656 = sshll.u32 %s643, 4
          %s657 = int_to_ptr.vmem [resolvable:$true] %s656
          %662 = dma.vmem_to_hbm [thread:$0]  %s657, 384, %s655, %s640, 192, 192, 12
        $region56: #{tpu_custom_call.1} parent=39 // pred_fallthru
          _
      $region40: #{tpu_custom_call.1} parent=5 // pred_fallthru
        _
      %p663 = scmp.le.s32.totalorder 2, %s18
      // Predicated region
      $region57: #{tpu_custom_call.1} parent=5 // pred_check
        %p664 = pneg %p663
      $region58: #{tpu_custom_call.1} parent=5 // pred_check_branch
        %666 = sbr.rel (%p664) target = $region60
      $region59: #{tpu_custom_call.1} parent=5 // pred_region
        %s667 = ssub.s32 %s18, 2
        // Predicated region
        $region61: #{tpu_custom_call.1} parent=59 // pred_check
          %p668 = pneg %p181
        $region62: #{tpu_custom_call.1} parent=59 // pred_check_branch
          %670 = sbr.rel (%p668) target = $region64
        $region63: #{tpu_custom_call.1} parent=59 // pred_region
          %s671 = sand.u32 %s166, 1
          %s672 = scalar_lea.sflag [#allocation5], %s671
          %s673 = sand.u32 %s166, 1
          %s674 = smul.addr %s673, 24
          %s675 = scalar_lea.vmem [#allocation8], %s674
          %676 = dma.done %s672, 384
        $region64: #{tpu_custom_call.1} parent=59 // pred_fallthru
          _
      $region60: #{tpu_custom_call.1} parent=5 // pred_fallthru
        _
    $region6: #{tpu_custom_call.1} parent=1 // loop_footer
      %s22 = sadd.s32 1, %s18
    $region7: #{tpu_custom_call.1} parent=1 // loop_footer_branch
      %17 = sbr.rel target = $region3
    $region8: #{tpu_custom_call.1} parent=1 // loop_exit
      _
    %677 = vsyncpa [#allocation4], 1
    %s678 = scalar_lea.sflag [#allocation4], 1
    %679 = vsyncpa %s678, 1
    %680 = vsyncpa [#allocation7], 1
    %681 = vsyncpa [#allocation5], 1
    %s682 = scalar_lea.sflag [#allocation5], 1
    %683 = vsyncpa %s682, 1

</llo_original>
